<compile_context>
chip_gen: v7x
topology: tpu7x:2x2x1
jax: 0.10.0
libtpu: 0.0.40
codegen_flags: <defaults>
</compile_context>

<pallas_src>
import functools

import jax
import jax.numpy as jnp
from jax.experimental import pallas as pl
from jax.experimental.pallas import tpu as pltpu

_NEG_BIG = -1e30  # finite "-inf" bias for padded vocab columns


def _round_up(x, m):
    return (x + m - 1) // m * m


def _vmem_capacity_bytes():
    try:
        return int(pltpu.get_tpu_info().vmem_capacity_bytes)
    except Exception:
        return 64 << 20  # conservative (v7x per-TC) fallback


def _generator_kernel(x_ref, wt_ref, b_ref, o_ref,
                      logits_ref, m_ref, l_ref,
                      *, tile_v, weight_resident):
    j = pl.program_id(1)

    @pl.when(j == 0)
    def _init():
        m_ref[...] = jnp.full_like(m_ref, -jnp.inf)
        l_ref[...] = jnp.zeros_like(l_ref)

    col0 = pl.multiple_of(j * tile_v, tile_v)

    if weight_resident:
        w = wt_ref[:, pl.ds(col0, tile_v)]          # resident full weight, slice it
    else:
        w = wt_ref[...]                             # streamed (d_model, tile_v) tile
    bias = b_ref[:, pl.ds(col0, tile_v)].astype(jnp.float32)  # resident full bias

    # (tile_n, d_model) @ (d_model, tile_v) on the MXU, f32 accumulation.
    logits = jnp.dot(x_ref[...], w, preferred_element_type=jnp.float32) + bias

    # park raw logits in the flat scratch slab (lane-dense, unmasked stores)
    logits_ref[:, pl.ds(col0, tile_v)] = logits

    # online logsumexp over the vocab axis
    m_prev = m_ref[...]
    m_new = jnp.maximum(m_prev, jnp.max(logits, axis=-1, keepdims=True))
    l_ref[...] = (l_ref[...] * jnp.exp(m_prev - m_new)
                  + jnp.sum(jnp.exp(logits - m_new), axis=-1, keepdims=True))
    m_ref[...] = m_new

    @pl.when(j == pl.num_programs(1) - 1)
    def _finalize():
        lse = m_ref[...] + jnp.log(l_ref[...])      # (tile_n, 1)
        # single vectorized slab op: ld / VALU / vst co-issue, no unrolled loop
        o_ref[...] = (logits_ref[...] - lse).astype(o_ref.dtype)


def prepare_generator_params(weight, bias, *, tile_v=128, param_dtype=None):
    """weight: [vocab, d_model] (PyTorch nn.Linear layout), bias: [vocab].

    Transpose + pad + (optionally) cast ONCE, outside the forward path.
    Pass param_dtype=jnp.bfloat16 to bake in bf16 matmul operands.
    """
    vocab, _ = weight.shape
    v_pad = _round_up(vocab, tile_v)
    wt = weight.T                                          # [d_model, vocab]
    if param_dtype is not None:
        wt = wt.astype(param_dtype)
    wt = jnp.pad(wt, ((0, 0), (0, v_pad - vocab)))
    b2 = jnp.pad(bias.astype(jnp.float32), (0, v_pad - vocab),
                 constant_values=_NEG_BIG).reshape(1, v_pad)
    return wt, b2, vocab


def generator_forward(x, wt, b2, vocab, *, tile_n=256, tile_v=256,
                      matmul_dtype=None, out_dtype=None):
    """x: [B, S, d_model]; wt: [d_model, V_pad] (pre-transposed/padded/cast);
    b2: [1, V_pad] f32; vocab: true vocab size.

    Tuning notes: v5e/v6e -> tile_n=256, tile_v up to 512, matmul_dtype=bf16
    (v6e prefers 256-multiples to fill the 2x256 MXU); v7x -> tile_n=128 for
    large vocabs (64 MiB/TC), out_dtype=bf16 to halve the resident slab.
    """
    B, S, d_model = x.shape
    v_pad = wt.shape[1]
    assert wt.shape[0] == d_model and b2.shape == (1, v_pad)
    assert tile_v % 128 == 0 and v_pad % tile_v == 0
    assert tile_n % 8 == 0

    out_dtype = x.dtype if out_dtype is None else out_dtype

    N = B * S
    n_pad = _round_up(N, tile_n)
    x2 = x.reshape(N, d_model)
    # only cast when the dtype actually differs (prepared bf16 weights pass through)
    if matmul_dtype is not None and x2.dtype != matmul_dtype:
        x2 = x2.astype(matmul_dtype)
    if matmul_dtype is not None and wt.dtype != matmul_dtype:
        wt = wt.astype(matmul_dtype)
    if n_pad != N:
        x2 = jnp.pad(x2, ((0, n_pad - N), (0, 0)))

    n_rtiles = n_pad // tile_n
    n_vtiles = v_pad // tile_v

    x_isz = jnp.dtype(x2.dtype).itemsize
    w_isz = jnp.dtype(wt.dtype).itemsize
    o_isz = jnp.dtype(out_dtype).itemsize

    cap = _vmem_capacity_bytes()                 # per-TensorCore capacity
    headroom = 2 << 20

    # keep the whole weight resident in VMEM (single DMA) when it is small
    weight_bytes = d_model * v_pad * w_isz
    weight_resident = (2 * weight_bytes) <= cap // 3

    weight_vmem = 2 * (weight_bytes if weight_resident
                       else d_model * tile_v * w_isz)
    need = (2 * tile_n * d_model * x_isz         # x tile (double buffered)
            + weight_vmem                        # weight
            + 2 * v_pad * 4                      # resident bias
            + 2 * tile_n * v_pad * o_isz         # resident output slab (dbl buf)
            + tile_n * v_pad * 4                 # flat f32 logits scratch
            + 2 * tile_n * 4)                    # running max / sum-exp
    vmem_limit = min(max(int(need * 1.2) + (1 << 20), 32 << 20), cap - headroom)

    if weight_resident:
        w_spec = pl.BlockSpec((d_model, v_pad), lambda i, j: (0, 0))
    else:
        w_spec = pl.BlockSpec((d_model, tile_v), lambda i, j: (0, j))

    kernel = functools.partial(_generator_kernel, tile_v=tile_v,
                               weight_resident=weight_resident)

    out = pl.pallas_call(
        kernel,
        out_shape=jax.ShapeDtypeStruct((n_pad, v_pad), out_dtype),
        grid=(n_rtiles, n_vtiles),
        in_specs=[
            pl.BlockSpec((tile_n, d_model), lambda i, j: (i, 0)),
            w_spec,
            pl.BlockSpec((1, v_pad), lambda i, j: (0, 0)),   # bias DMA'd once
        ],
        out_specs=pl.BlockSpec((tile_n, v_pad), lambda i, j: (i, 0)),
        scratch_shapes=[
            pltpu.VMEM((tile_n, v_pad), jnp.float32),   # flat raw-logits slab
            pltpu.VMEM((tile_n, 1), jnp.float32),       # running max
            pltpu.VMEM((tile_n, 1), jnp.float32),       # running sum-exp
        ],
        compiler_params=pltpu.CompilerParams(
            dimension_semantics=("parallel", "arbitrary"),
            vmem_limit_bytes=vmem_limit),
    )(x2, wt, b2)

    return out[:N, :vocab].reshape(B, S, vocab)


if __name__ == "__main__":
    # small, module-consistent shapes; vocab=200 exercises vocab padding and
    # two vocab tiles (tile_v=128), N=16 exercises row padding.
    B, S, d_model, vocab = 2, 8, 32, 200

    key = jax.random.PRNGKey(0)
    kx, kw, kb = jax.random.split(key, 3)

    x = jax.random.normal(kx, (B, S, d_model), dtype=jnp.float32)
    # synthetic nn.Linear(d_model, vocab) params: W [vocab, d_model], b [vocab]
    weight = jax.random.normal(kw, (vocab, d_model), dtype=jnp.float32) * 0.02
    bias = jax.random.normal(kb, (vocab,), dtype=jnp.float32) * 0.02

    # one-time parameter prep (transpose + pad + optional dtype cast hoisted out
    # of the forward path; pass param_dtype=jnp.bfloat16 on v5e/v6e/v7x)
    wt, b2, vocab_real = prepare_generator_params(weight, bias, tile_v=128)

    # f32 matmul here so the correctness check is tight; with
    # matmul_dtype=bf16 loosen the tolerance (logits move by ~1e-3 relative).
    out = generator_forward(x, wt, b2, vocab_real, tile_n=128, tile_v=128)
    out = jax.block_until_ready(out)

    # sanity check against plain-JAX reference (silent unless it fails)
    ref = jax.nn.log_softmax(x @ weight.T + bias, axis=-1)
    assert out.shape == (B, S, vocab)
    assert jnp.allclose(out, ref, atol=2e-4, rtol=1e-4), \
        float(jnp.max(jnp.abs(out - ref)))

    print("KERNEL_OK")
</pallas_src>

<mosaic_0001>
module attributes {stable_mosaic.version = 11 : i64} {
  func.func @_generator_kernel(%arg0: i32, %arg1: i32, %arg2: memref<128x32xf32, #tpu.memory_space<vmem>>, %arg3: memref<32x256xf32, #tpu.memory_space<vmem>>, %arg4: memref<1x256xf32, #tpu.memory_space<vmem>>, %arg5: memref<128x256xf32, #tpu.memory_space<vmem>>, %arg6: memref<128x256xf32, #tpu.memory_space<vmem>>, %arg7: memref<128x1xf32, #tpu.memory_space<vmem>>, %arg8: memref<128x1xf32, #tpu.memory_space<vmem>>) attributes {dimension_semantics = [#tpu.dimension_semantics<parallel>, #tpu.dimension_semantics<arbitrary>], iteration_bounds = array<i64: 1, 2>, scalar_prefetch = 0 : i64, scratch_operands = 3 : i64, tpu.core_type = #tpu.core_type<tc>, window_params = [{transform_indices = @transform_0, window_bounds = array<i64: 128, 32>}, {pipeline_mode = #tpu.pipeline_mode<synchronous>, transform_indices = @transform_1, window_bounds = array<i64: 32, 256>}, {pipeline_mode = #tpu.pipeline_mode<synchronous>, transform_indices = @transform_2, window_bounds = array<i64: 1, 256>}, {transform_indices = @transform_3, window_bounds = array<i64: 128, 256>}]} {
    %c0_i32 = arith.constant 0 : i32
    %0 = arith.cmpi eq, %arg1, %c0_i32 : i32
    %1 = arith.extui %0 : i1 to i32
    %c0_i32_0 = arith.constant 0 : i32
    %2 = arith.cmpi ne, %1, %c0_i32_0 : i32
    scf.if %2 {
      %cst_16 = arith.constant 0xFF800000 : f32
      %34 = vector.broadcast %cst_16 : f32 to vector<128x1xf32>
      %c0_17 = arith.constant 0 : index
      %c0_18 = arith.constant 0 : index
      %35 = vector.load %arg7[%c0_17, %c0_18] : memref<128x1xf32, #tpu.memory_space<vmem>>, vector<128x1xf32>
      tpu.vector_store %arg7[%c0_17, %c0_18], %34 {strides = array<i32>} : memref<128x1xf32, #tpu.memory_space<vmem>>, vector<128x1xf32>,
      %cst_19 = arith.constant 0.000000e+00 : f32
      %36 = vector.broadcast %cst_19 : f32 to vector<128x1xf32>
      %c0_20 = arith.constant 0 : index
      %c0_21 = arith.constant 0 : index
      %37 = vector.load %arg8[%c0_20, %c0_21] : memref<128x1xf32, #tpu.memory_space<vmem>>, vector<128x1xf32>
      tpu.vector_store %arg8[%c0_20, %c0_21], %36 {strides = array<i32>} : memref<128x1xf32, #tpu.memory_space<vmem>>, vector<128x1xf32>,
    } else {
    }
    %c128_i32 = arith.constant 128 : i32
    %3 = arith.muli %arg1, %c128_i32 : i32
    %4 = tpu.assume_multiple %3, 128 : i32
    %c0 = arith.constant 0 : index
    %5 = arith.index_cast %4 : i32 to index
    %6 = vector.load %arg3[%c0, %5] : memref<32x256xf32, #tpu.memory_space<vmem>>, vector<32x128xf32>
    %c0_1 = arith.constant 0 : index
    %7 = arith.index_cast %4 : i32 to index
    %8 = vector.load %arg4[%c0_1, %7] : memref<1x256xf32, #tpu.memory_space<vmem>>, vector<1x128xf32>
    %c0_2 = arith.constant 0 : index
    %c0_3 = arith.constant 0 : index
    %9 = vector.load %arg2[%c0_2, %c0_3] : memref<128x32xf32, #tpu.memory_space<vmem>>, vector<128x32xf32>
    %cst = arith.constant dense<0.000000e+00> : vector<128x128xf32>
    %10 = tpu.matmul %9, %6, %cst {dimension_numbers = #tpu.dot_dimension_numbers<[1], [0], [0], [1], [0, 0, 1, 1], [], []>} : vector<128x32xf32>, vector<32x128xf32>, vector<128x128xf32> -> vector<128x128xf32>
    %11 = vector.broadcast %8 : vector<1x128xf32> to vector<128x128xf32>
    %12 = arith.addf %10, %11 : vector<128x128xf32>
    %c0_4 = arith.constant 0 : index
    %13 = arith.index_cast %4 : i32 to index
    %14 = vector.load %arg6[%c0_4, %13] : memref<128x256xf32, #tpu.memory_space<vmem>>, vector<128x128xf32>
    tpu.vector_store %arg6[%c0_4, %13], %12 {strides = array<i32>} : memref<128x256xf32, #tpu.memory_space<vmem>>, vector<128x128xf32>,
    %c0_5 = arith.constant 0 : index
    %c0_6 = arith.constant 0 : index
    %15 = vector.load %arg7[%c0_5, %c0_6] : memref<128x1xf32, #tpu.memory_space<vmem>>, vector<128x1xf32>
    %cst_7 = arith.constant dense<0xFF800000> : vector<128xf32>
    %16 = vector.multi_reduction <maximumf>, %12, %cst_7 [1] : vector<128x128xf32> to vector<128xf32>
    %17 = vector.shape_cast %16 : vector<128xf32> to vector<128x1xf32>
    %18 = arith.maximumf %15, %17 : vector<128x1xf32>
    %c0_8 = arith.constant 0 : index
    %c0_9 = arith.constant 0 : index
    %19 = vector.load %arg8[%c0_8, %c0_9] : memref<128x1xf32, #tpu.memory_space<vmem>>, vector<128x1xf32>
    %20 = arith.subf %15, %18 : vector<128x1xf32>
    %21 = math.exp %20 : vector<128x1xf32>
    %22 = arith.mulf %19, %21 : vector<128x1xf32>
    %23 = vector.broadcast %18 : vector<128x1xf32> to vector<128x128xf32>
    %24 = arith.subf %12, %23 : vector<128x128xf32>
    %25 = math.exp %24 : vector<128x128xf32>
    %cst_10 = arith.constant dense<0.000000e+00> : vector<128xf32>
    %26 = vector.multi_reduction <add>, %25, %cst_10 [1] : vector<128x128xf32> to vector<128xf32>
    %27 = vector.shape_cast %26 : vector<128xf32> to vector<128x1xf32>
    %28 = arith.addf %22, %27 : vector<128x1xf32>
    %c0_11 = arith.constant 0 : index
    %c0_12 = arith.constant 0 : index
    %29 = vector.load %arg8[%c0_11, %c0_12] : memref<128x1xf32, #tpu.memory_space<vmem>>, vector<128x1xf32>
    tpu.vector_store %arg8[%c0_11, %c0_12], %28 {strides = array<i32>} : memref<128x1xf32, #tpu.memory_space<vmem>>, vector<128x1xf32>,
    %c0_13 = arith.constant 0 : index
    %c0_14 = arith.constant 0 : index
    %30 = vector.load %arg7[%c0_13, %c0_14] : memref<128x1xf32, #tpu.memory_space<vmem>>, vector<128x1xf32>
    tpu.vector_store %arg7[%c0_13, %c0_14], %18 {strides = array<i32>} : memref<128x1xf32, #tpu.memory_space<vmem>>, vector<128x1xf32>,
    %c1_i32 = arith.constant 1 : i32
    %31 = arith.cmpi eq, %arg1, %c1_i32 : i32
    %32 = arith.extui %31 : i1 to i32
    %c0_i32_15 = arith.constant 0 : i32
    %33 = arith.cmpi ne, %32, %c0_i32_15 : i32
    scf.if %33 {
      %c0_16 = arith.constant 0 : index
      %c0_17 = arith.constant 0 : index
      %34 = vector.load %arg7[%c0_16, %c0_17] : memref<128x1xf32, #tpu.memory_space<vmem>>, vector<128x1xf32>
      %c0_18 = arith.constant 0 : index
      %c0_19 = arith.constant 0 : index
      %35 = vector.load %arg8[%c0_18, %c0_19] : memref<128x1xf32, #tpu.memory_space<vmem>>, vector<128x1xf32>
      %36 = math.log %35 : vector<128x1xf32>
      %37 = arith.addf %34, %36 : vector<128x1xf32>
      %c0_20 = arith.constant 0 : index
      %c0_21 = arith.constant 0 : index
      %38 = vector.load %arg6[%c0_20, %c0_21] : memref<128x256xf32, #tpu.memory_space<vmem>>, vector<128x256xf32>
      %39 = vector.broadcast %37 : vector<128x1xf32> to vector<128x256xf32>
      %40 = arith.subf %38, %39 : vector<128x256xf32>
      %c0_22 = arith.constant 0 : index
      %c0_23 = arith.constant 0 : index
      %41 = vector.load %arg5[%c0_22, %c0_23] : memref<128x256xf32, #tpu.memory_space<vmem>>, vector<128x256xf32>
      tpu.vector_store %arg5[%c0_22, %c0_23], %40 {strides = array<i32>} : memref<128x256xf32, #tpu.memory_space<vmem>>, vector<128x256xf32>,
    } else {
    }
    return
  }
  func.func @transform_0(%arg0: i32, %arg1: i32) -> (i32, i32) {
    %c0_i32 = arith.constant 0 : i32
    %c0_i32_0 = arith.constant 0 : i32
    return %arg0, %c0_i32 : i32, i32
  }
  func.func @transform_1(%arg0: i32, %arg1: i32) -> (i32, i32) {
    %c0_i32 = arith.constant 0 : i32
    %c0_i32_0 = arith.constant 0 : i32
    %c0_i32_1 = arith.constant 0 : i32
    return %c0_i32, %c0_i32_0 : i32, i32
  }
  func.func @transform_2(%arg0: i32, %arg1: i32) -> (i32, i32) {
    %c0_i32 = arith.constant 0 : i32
    %c0_i32_0 = arith.constant 0 : i32
    %c0_i32_1 = arith.constant 0 : i32
    return %c0_i32, %c0_i32_0 : i32, i32
  }
  func.func @transform_3(%arg0: i32, %arg1: i32) -> (i32, i32) {
    %c0_i32 = arith.constant 0 : i32
    %c0_i32_0 = arith.constant 0 : i32
    return %arg0, %c0_i32 : i32, i32
  }
}

</mosaic_0001>

<llo_original>
// kernel: tpu_custom_call.1
$region0: #{tpu_custom_call.1}
  #allocation0 [shape = 'u32[]', space=smem, size = 0x4, offset = 0x4, fixed_abs, tag = 'smem constant byte address 0x4 - core index']
  #allocation1 [shape = 'u32[144,128]{1,0:T(1,128)}', space=vmem, size = 0x12000, scoped, tag = 'internal scratch']
  #allocation2 [shape = 'f32[128,256]{1,0:T(8,128)}', space=vmem, size = 0x20000, scoped, tag = 'scratch operand']
  #allocation3 [shape = 'f32[128,1]{1,0:T(8,128)}', space=vmem, size = 0x10000, scoped, tag = 'scratch operand']
  #allocation4 [shape = 'f32[128,1]{1,0:T(8,128)}', space=vmem, size = 0x10000, scoped, tag = 'scratch operand']
  %s0 = inlined_call_operand.vmem [shape: f32[128,32], index: 0, kind: input, shape index: {}]
  %s1 = inlined_call_operand.vmem [shape: f32[32,256], index: 1, kind: input, shape index: {}]
  %s2 = inlined_call_operand.vmem [shape: f32[1,256], index: 2, kind: input, shape index: {}]
  %s3 = inlined_call_operand.hbm [shape: f32[128,256], index: 3, kind: output, shape index: {}]
  %s4 = sld [smem:[#allocation0]]
  $region53: #{tpu_custom_call.1} parent=0
    _
  %s6 = ssub.s32 1, %s4
  %s7 = scalar_select 0, %s6, %s4
  $region1: #{tpu_custom_call.1} parent=0
    #allocation5 [shape = 'u8[131072]{0}', space=vmem, size = 0x20000, scoped, tag = 'output window, operand 0, single buffered']
    #allocation6 [shape = 's32[2]{0}', space=sflag, size = 0x8, scoped, tag = 'scoped memory for tpu_custom_call.1']
    %8 = vsyncpa [#allocation6], 0
    loop: start=0, step=1, limit=4
    $region2: #{tpu_custom_call.1} parent=1 // loop_pre_header
      _
    $region3: #{tpu_custom_call.1} parent=1 // loop_header
      %s10 = sphi 0, %s14
      %p11 = scmp.ge.s32.totalorder %s10, 4
      %s17 = sphi 0, %s29
      %s18 = sphi 0, %s25
      %s19 = sphi 0, %s17
      %s20 = sphi 0, %s18
      %s21 = sphi 0, %s19
      %s22 = sphi 0, %s20
      %s32 = sphi 0, %s34
      %s35 = sphi 0, %s32
      %s36 = sphi 0, %s35
      %s52 = sphi 0, %s36
      %s56 = sphi 0, %s56
      %s58 = sphi 0, %s56
      %s59 = sphi 0, %s58
      %s73 = sphi 0, %s59
      %s77 = sphi 0, %s77
      %s79 = sphi 0, %s77
      %s80 = sphi 0, %s79
      %s94 = sphi 0, %s80
      %s100 = sphi 0, %s102
      %s103 = sphi 0, %s100
      %s104 = sphi 0, %s103
      %s120 = sphi 0, %s104
    $region4: #{tpu_custom_call.1} parent=1 // loop_header_branch
      %13 = sbr.rel (%p11) target = $region8
    $region5: #{tpu_custom_call.1} parent=1 // loop_body
      %s15 = ssub.s32 %s10, 1
      %s16 = ssub.s32 %s10, 2
      %s23 = sadd.s32 1, %s18
      %p24 = scmp.ge.s32.totalorder %s23, 2
      %s25 = scalar_select %p24, 0, %s23
      %s26 = sadd.s32 1, %s17
      %s27 = scalar_select %p24, %s26, %s17
      %p28 = scmp.ge.s32.totalorder %s27, 1
      %s29 = scalar_select %p28, 0, %s27
      %s30 = ssub.s32 %s17, %s29
      %p31 = scmp.eq.s32.totalorder %s30, 0
      %s33 = sadd.s32 %s32, 1
      %s34 = scalar_select %p31, %s32, %s33
      %p37 = pneg %p31
      %p38 = scmp.eq.s32.totalorder %s10, 1
      %p39 = por %p37, %p38
      %p40 = scmp.ne.s32.totalorder %s32, %s35
      %p41 = scmp.eq.s32.totalorder %s10, 0
      %p42 = por %p40, %p41
      %p43 = scmp.ne.s32.totalorder %s32, %s35
      %p44 = scmp.eq.s32.totalorder %s15, 1
      %p45 = por %p43, %p44
      %p46 = scmp.ne.s32.totalorder %s35, %s36
      %p47 = scmp.eq.s32.totalorder %s15, 0
      %p48 = por %p46, %p47
      %p49 = scmp.ne.s32.totalorder %s35, %s36
      %p50 = scmp.eq.s32.totalorder %s16, 1
      %p51 = por %p49, %p50
      %p53 = scmp.ne.s32.totalorder %s36, %s52
      %p54 = scmp.eq.s32.totalorder %s16, 0
      %p55 = por %p53, %p54
      %s57 = sadd.s32 %s56, 1
      %p60 = scmp.eq.s32.totalorder %s10, 1
      %p61 = scmp.ne.s32.totalorder %s56, %s58
      %p62 = scmp.eq.s32.totalorder %s10, 0
      %p63 = por %p61, %p62
      %p64 = scmp.ne.s32.totalorder %s56, %s58
      %p65 = scmp.eq.s32.totalorder %s15, 1
      %p66 = por %p64, %p65
      %p67 = scmp.ne.s32.totalorder %s58, %s59
      %p68 = scmp.eq.s32.totalorder %s15, 0
      %p69 = por %p67, %p68
      %p70 = scmp.ne.s32.totalorder %s58, %s59
      %p71 = scmp.eq.s32.totalorder %s16, 1
      %p72 = por %p70, %p71
      %p74 = scmp.ne.s32.totalorder %s59, %s73
      %p75 = scmp.eq.s32.totalorder %s16, 0
      %p76 = por %p74, %p75
      %s78 = sadd.s32 %s77, 1
      %p81 = scmp.eq.s32.totalorder %s10, 1
      %p82 = scmp.ne.s32.totalorder %s77, %s79
      %p83 = scmp.eq.s32.totalorder %s10, 0
      %p84 = por %p82, %p83
      %p85 = scmp.ne.s32.totalorder %s77, %s79
      %p86 = scmp.eq.s32.totalorder %s15, 1
      %p87 = por %p85, %p86
      %p88 = scmp.ne.s32.totalorder %s79, %s80
      %p89 = scmp.eq.s32.totalorder %s15, 0
      %p90 = por %p88, %p89
      %p91 = scmp.ne.s32.totalorder %s79, %s80
      %p92 = scmp.eq.s32.totalorder %s16, 1
      %p93 = por %p91, %p92
      %p95 = scmp.ne.s32.totalorder %s80, %s94
      %p96 = scmp.eq.s32.totalorder %s16, 0
      %p97 = por %p95, %p96
      %s98 = ssub.s32 %s17, %s29
      %p99 = scmp.eq.s32.totalorder %s98, 0
      %s101 = sadd.s32 %s100, 1
      %s102 = scalar_select %p99, %s100, %s101
      %p105 = pneg %p99
      %p106 = scmp.eq.s32.totalorder %s10, 1
      %p107 = por %p105, %p106
      %p108 = scmp.ne.s32.totalorder %s100, %s103
      %p109 = scmp.eq.s32.totalorder %s10, 0
      %p110 = por %p108, %p109
      %p111 = scmp.ne.s32.totalorder %s100, %s103
      %p112 = scmp.eq.s32.totalorder %s15, 1
      %p113 = por %p111, %p112
      %p114 = scmp.ne.s32.totalorder %s103, %s104
      %p115 = scmp.eq.s32.totalorder %s15, 0
      %p116 = por %p114, %p115
      %p117 = scmp.ne.s32.totalorder %s103, %s104
      %p118 = scmp.eq.s32.totalorder %s16, 1
      %p119 = por %p117, %p118
      %p121 = scmp.ne.s32.totalorder %s104, %s120
      %p122 = scmp.eq.s32.totalorder %s16, 0
      %p123 = por %p121, %p122
      %p124 = scmp.le.s32.totalorder 1, %s10
      %p125 = scmp.lt.s32.totalorder %s10, 3
      %p126 = pnand %p124, %p125
      %p127 = pneg %p126
      // Predicated region
      $region9: #{tpu_custom_call.1} parent=5 // pred_check
        _
      $region10: #{tpu_custom_call.1} parent=5 // pred_check_branch
        %129 = sbr.rel (%p126) target = $region12
      $region11: #{tpu_custom_call.1} parent=5 // pred_region
        %s130 = ssub.s32 %s10, 1
        // Predicated region
        $region13: #{tpu_custom_call.1} parent=11 // pred_check
          %p131 = pneg %p48
        $region14: #{tpu_custom_call.1} parent=11 // pred_check_branch
          %133 = sbr.rel (%p131) target = $region16
        $region15: #{tpu_custom_call.1} parent=11 // pred_region
          %s134 = smul.u32 16, %s19
          %p135 = scmp.lt.s32.totalorder %s134, 15
          %s136 = scalar_select %p135, %s134, 15
          %s137 = smul.addr %s136, 8
          %s138 = scalar_lea.vmem %s0, %s137
          %s139 = smul.u32 16, %s19
        $region16: #{tpu_custom_call.1} parent=11 // pred_fallthru
          _
        // Predicated region
        $region17: #{tpu_custom_call.1} parent=11 // pred_check
          %p140 = pneg %p69
        $region18: #{tpu_custom_call.1} parent=11 // pred_check_branch
          %142 = sbr.rel (%p140) target = $region20
        $region19: #{tpu_custom_call.1} parent=11 // pred_region
          _
        $region20: #{tpu_custom_call.1} parent=11 // pred_fallthru
          _
        // Predicated region
        $region21: #{tpu_custom_call.1} parent=11 // pred_check
          %p143 = pneg %p90
        $region22: #{tpu_custom_call.1} parent=11 // pred_check_branch
          %145 = sbr.rel (%p143) target = $region24
        $region23: #{tpu_custom_call.1} parent=11 // pred_region
          _
        $region24: #{tpu_custom_call.1} parent=11 // pred_fallthru
          _
      $region12: #{tpu_custom_call.1} parent=5 // pred_fallthru
        _
      %p146 = scmp.lt.s32.totalorder %s10, 2
      // Predicated region
      $region25: #{tpu_custom_call.1} parent=5 // pred_check
        %p147 = pneg %p146
      $region26: #{tpu_custom_call.1} parent=5 // pred_check_branch
        %149 = sbr.rel (%p147) target = $region28
      $region27: #{tpu_custom_call.1} parent=5 // pred_region
        _
      $region28: #{tpu_custom_call.1} parent=5 // pred_fallthru
        _
      %p150 = scmp.le.s32.totalorder 1, %s10
      %p151 = scmp.lt.s32.totalorder %s10, 3
      %p152 = pnand %p150, %p151
      %p153 = pneg %p152
      // Predicated region
      $region29: #{tpu_custom_call.1} parent=5 // pred_check
        _
      $region30: #{tpu_custom_call.1} parent=5 // pred_check_branch
        %155 = sbr.rel (%p152) target = $region32
      $region31: #{tpu_custom_call.1} parent=5 // pred_region
        %s156 = ssub.s32 %s10, 1
        %s157 = smul.u32 16, %s19
        %p158 = scmp.lt.s32.totalorder %s157, 15
        %s159 = scalar_select %p158, %s157, 15
        %s160 = smul.addr %s159, 8
        %s161 = scalar_lea.vmem %s0, %s160
        %p162 = pneg %p48
        %p163 = pneg %p45
        %p164 = pneg %p69
        %p165 = pneg %p66
        %p166 = pneg %p90
        %p167 = pneg %p87
        %p168 = pneg %p116
        %p169 = pneg %p113
        %s170 = smul.u32 16, %s19
        %p171 = scmp.lt.s32.totalorder %s170, 15
        %s172 = scalar_select %p171, %s170, 15
        %s173 = smul.addr %s172, 8
        %s174 = scalar_lea.vmem %s0, %s173
        %s175 = smul.u32 16, %s19
        %s176 = smul.u32 16, %s19
        %p177 = scmp.eq.s32.totalorder %s20, 0
        // Predicated region
        $region33: #{tpu_custom_call.1} parent=31 // pred_check
          %p178 = pneg %p177
        $region34: #{tpu_custom_call.1} parent=31 // pred_check_branch
          %180 = sbr.rel (%p178) target = $region36
        $region35: #{tpu_custom_call.1} parent=31 // pred_region
          %vm181 = vcmask 7168
          %182 = vst.msk [vmem:[#allocation3] sm:$0xff] %vm181, -inf
          %183 = vst.msk [vmem:[#allocation3 + $0x8] sm:$0xff] %vm181, -inf
          %184 = vst.msk [vmem:[#allocation3 + $0x10] sm:$0xff] %vm181, -inf
          %185 = vst.msk [vmem:[#allocation3 + $0x18] sm:$0xff] %vm181, -inf
          %186 = vst.msk [vmem:[#allocation3 + $0x20] sm:$0xff] %vm181, -inf
          %187 = vst.msk [vmem:[#allocation3 + $0x28] sm:$0xff] %vm181, -inf
          %188 = vst.msk [vmem:[#allocation3 + $0x30] sm:$0xff] %vm181, -inf
          %189 = vst.msk [vmem:[#allocation3 + $0x38] sm:$0xff] %vm181, -inf
          %190 = vst.msk [vmem:[#allocation3 + $0x40] sm:$0xff] %vm181, -inf
          %191 = vst.msk [vmem:[#allocation3 + $0x48] sm:$0xff] %vm181, -inf
          %192 = vst.msk [vmem:[#allocation3 + $0x50] sm:$0xff] %vm181, -inf
          %193 = vst.msk [vmem:[#allocation3 + $0x58] sm:$0xff] %vm181, -inf
          %194 = vst.msk [vmem:[#allocation3 + $0x60] sm:$0xff] %vm181, -inf
          %195 = vst.msk [vmem:[#allocation3 + $0x68] sm:$0xff] %vm181, -inf
          %196 = vst.msk [vmem:[#allocation3 + $0x70] sm:$0xff] %vm181, -inf
          %197 = vst.msk [vmem:[#allocation3 + $0x78] sm:$0xff] %vm181, -inf
          %198 = vst.msk [vmem:[#allocation4] sm:$0xff] %vm181, 0.0
          %199 = vst.msk [vmem:[#allocation4 + $0x8] sm:$0xff] %vm181, 0.0
          %200 = vst.msk [vmem:[#allocation4 + $0x10] sm:$0xff] %vm181, 0.0
          %201 = vst.msk [vmem:[#allocation4 + $0x18] sm:$0xff] %vm181, 0.0
          %202 = vst.msk [vmem:[#allocation4 + $0x20] sm:$0xff] %vm181, 0.0
          %203 = vst.msk [vmem:[#allocation4 + $0x28] sm:$0xff] %vm181, 0.0
          %204 = vst.msk [vmem:[#allocation4 + $0x30] sm:$0xff] %vm181, 0.0
          %205 = vst.msk [vmem:[#allocation4 + $0x38] sm:$0xff] %vm181, 0.0
          %206 = vst.msk [vmem:[#allocation4 + $0x40] sm:$0xff] %vm181, 0.0
          %207 = vst.msk [vmem:[#allocation4 + $0x48] sm:$0xff] %vm181, 0.0
          %208 = vst.msk [vmem:[#allocation4 + $0x50] sm:$0xff] %vm181, 0.0
          %209 = vst.msk [vmem:[#allocation4 + $0x58] sm:$0xff] %vm181, 0.0
          %210 = vst.msk [vmem:[#allocation4 + $0x60] sm:$0xff] %vm181, 0.0
          %211 = vst.msk [vmem:[#allocation4 + $0x68] sm:$0xff] %vm181, 0.0
          %212 = vst.msk [vmem:[#allocation4 + $0x70] sm:$0xff] %vm181, 0.0
          %213 = vst.msk [vmem:[#allocation4 + $0x78] sm:$0xff] %vm181, 0.0
        $region36: #{tpu_custom_call.1} parent=31 // pred_fallthru
          _
        %s214 = smul.u32 %s20, 128
        %s215 = sshra.s32 %s214, 7
        %s216 = sand.u32 %s214, 127
        %s217 = smul.addr %s215, 8
        %s218 = scalar_lea.vmem %s1, %s217
        %v219 = vld [vmem:[%s218] sm:$0xff]
        %v220 = vld [vmem:[%s218 + $0x10] sm:$0xff]
        %v221 = vld [vmem:[%s218 + $0x20] sm:$0xff]
        %v222 = vld [vmem:[%s218 + $0x30] sm:$0xff]
        %s223 = scalar_lea.vmem %s2, %s215
        %v224 = vld [vmem:[%s223] sm:$0x1]
        %v225 = vld [vmem:[%s174] sm:$0xff]
        %v226 = vld [vmem:[%s174 + $0x8] sm:$0xff]
        %v227 = vld [vmem:[%s174 + $0x10] sm:$0xff]
        %v228 = vld [vmem:[%s174 + $0x18] sm:$0xff]
        %v229 = vld [vmem:[%s174 + $0x20] sm:$0xff]
        %v230 = vld [vmem:[%s174 + $0x28] sm:$0xff]
        %v231 = vld [vmem:[%s174 + $0x30] sm:$0xff]
        %v232 = vld [vmem:[%s174 + $0x38] sm:$0xff]
        %v233 = vld [vmem:[%s174 + $0x40] sm:$0xff]
        %v234 = vld [vmem:[%s174 + $0x48] sm:$0xff]
        %v235 = vld [vmem:[%s174 + $0x50] sm:$0xff]
        %v236 = vld [vmem:[%s174 + $0x58] sm:$0xff]
        %v237 = vld [vmem:[%s174 + $0x60] sm:$0xff]
        %v238 = vld [vmem:[%s174 + $0x68] sm:$0xff]
        %v239 = vld [vmem:[%s174 + $0x70] sm:$0xff]
        %v240 = vld [vmem:[%s174 + $0x78] sm:$0xff]
        %v242 = vlaneseq
        %v243 = vshrl.u32 %v242, 7
        %v244 = vsub.s32 0, %v243
        %v245 = vrot.slane %v224, %v244
        %vm247 = vcmask 261120
        %v249 = vsel %vm247, %v225, 0
        %v252 = vsel %vm247, %v226, 0
        %v255 = vsel %vm247, %v227, 0
        %v258 = vsel %vm247, %v228, 0
        %v261 = vsel %vm247, %v229, 0
        %v264 = vsel %vm247, %v230, 0
        %v267 = vsel %vm247, %v231, 0
        %v270 = vsel %vm247, %v232, 0
        %v273 = vsel %vm247, %v233, 0
        %v276 = vsel %vm247, %v234, 0
        %v279 = vsel %vm247, %v235, 0
        %v282 = vsel %vm247, %v236, 0
        %v285 = vsel %vm247, %v237, 0
        %v288 = vsel %vm247, %v238, 0
        %v291 = vsel %vm247, %v239, 0
        %v294 = vsel %vm247, %v240, 0
        %296 = vmatprep.subr.mxu0 0.0
        %297 = vmatpush1.msra.mxu0 %v219
        %298 = vmatprep.subr.mxu0 0.0
        %299 = vmatpush1.msra.mxu0 %v220
        %300 = vmatprep.subr.mxu0 0.0
        %301 = vmatpush1.msra.mxu0 %v221
        %302 = vmatprep.subr.mxu0 0.0
        %303 = vmatpush1.msra.mxu0 %v222
        %304 = vmatprep.subr.mxu0 0.0
        %305 = vmatpush1.msra.mxu0 0.0
        %306 = vmatprep.subr.mxu0 0.0
        %307 = vmatpush1.msra.mxu0 0.0
        %308 = vmatprep.subr.mxu0 0.0
        %309 = vmatpush1.msra.mxu0 0.0
        %310 = vmatprep.subr.mxu0 0.0
        %311 = vmatpush1.msra.mxu0 0.0
        %312 = vmatprep.subr.mxu0 0.0
        %313 = vmatpush1.msra.mxu0 0.0
        %314 = vmatprep.subr.mxu0 0.0
        %315 = vmatpush1.msra.mxu0 0.0
        %316 = vmatprep.subr.mxu0 0.0
        %317 = vmatpush1.msra.mxu0 0.0
        %318 = vmatprep.subr.mxu0 0.0
        %319 = vmatpush1.msra.mxu0 0.0
        %320 = vmatprep.subr.mxu0 0.0
        %321 = vmatpush1.msra.mxu0 0.0
        %322 = vmatprep.subr.mxu0 0.0
        %323 = vmatpush1.msra.mxu0 0.0
        %324 = vmatprep.subr.mxu0 0.0
        %325 = vmatpush1.msra.mxu0 0.0
        %326 = vmatprep.subr.mxu0 0.0
        %327 = vmatpush1.msra.mxu0 0.0
        %328 = vmatprep.subr.mxu0 0.0
        %329 = vmatpush1.msra.mxu0 0.0
        %330 = vmatprep.subr.mxu0 0.0
        %331 = vmatpush1.msra.mxu0 0.0
        %332 = vmatprep.subr.mxu0 0.0
        %333 = vmatpush1.msra.mxu0 0.0
        %334 = vmatprep.subr.mxu0 0.0
        %335 = vmatpush1.msra.mxu0 0.0
        %336 = vmatprep.subr.mxu0 0.0
        %337 = vmatpush1.msra.mxu0 0.0
        %338 = vmatprep.subr.mxu0 0.0
        %339 = vmatpush1.msra.mxu0 0.0
        %340 = vmatprep.subr.mxu0 0.0
        %341 = vmatpush1.msra.mxu0 0.0
        %342 = vmatprep.subr.mxu0 0.0
        %343 = vmatpush1.msra.mxu0 0.0
        %344 = vmatprep.subr.mxu0 0.0
        %345 = vmatpush1.msra.mxu0 0.0
        %346 = vmatprep.subr.mxu0 0.0
        %347 = vmatpush1.msra.mxu0 0.0
        %348 = vmatprep.subr.mxu0 0.0
        %349 = vmatpush1.msra.mxu0 0.0
        %350 = vmatprep.subr.mxu0 0.0
        %351 = vmatpush1.msra.mxu0 0.0
        %352 = vmatprep.subr.mxu0 0.0
        %353 = vmatpush1.msra.mxu0 0.0
        %354 = vmatprep.subr.mxu0 0.0
        %355 = vmatpush1.msra.mxu0 0.0
        %356 = vmatprep.subr.mxu0 0.0
        %357 = vmatpush1.msra.mxu0 0.0
        %358 = vmatprep.subr.mxu0 0.0
        %359 = vmatpush1.msra.mxu0 0.0
        %360 = vmatprep.mubr.f32.mxu0 0.0
        %361 = vmatmul.mubr.f32.gmra.mrb[0].mxu0 %v249
        %v362 = vpop.f32.mrb[0].mxu0
        %v363 = vadd.f32 %v245, %v362
        %v364 = vpop.f32.mrb[0].mxu0
        %365 = vmatprep.mubr.f32.mxu0 0.0
        %366 = vmatmul.mubr.f32.gmra.mrb[0].mxu0 %v252
        %v367 = vpop.f32.mrb[0].mxu0
        %v368 = vadd.f32 %v245, %v367
        %v369 = vpop.f32.mrb[0].mxu0
        %370 = vmatprep.mubr.f32.mxu0 0.0
        %371 = vmatmul.mubr.f32.gmra.mrb[0].mxu0 %v255
        %v372 = vpop.f32.mrb[0].mxu0
        %v373 = vadd.f32 %v245, %v372
        %v374 = vpop.f32.mrb[0].mxu0
        %375 = vmatprep.mubr.f32.mxu0 0.0
        %376 = vmatmul.mubr.f32.gmra.mrb[0].mxu0 %v258
        %v377 = vpop.f32.mrb[0].mxu0
        %v378 = vadd.f32 %v245, %v377
        %v379 = vpop.f32.mrb[0].mxu0
        %380 = vmatprep.mubr.f32.mxu0 0.0
        %381 = vmatmul.mubr.f32.gmra.mrb[0].mxu0 %v261
        %v382 = vpop.f32.mrb[0].mxu0
        %v383 = vadd.f32 %v245, %v382
        %v384 = vpop.f32.mrb[0].mxu0
        %385 = vmatprep.mubr.f32.mxu0 0.0
        %386 = vmatmul.mubr.f32.gmra.mrb[0].mxu0 %v264
        %v387 = vpop.f32.mrb[0].mxu0
        %v388 = vadd.f32 %v245, %v387
        %v389 = vpop.f32.mrb[0].mxu0
        %390 = vmatprep.mubr.f32.mxu0 0.0
        %391 = vmatmul.mubr.f32.gmra.mrb[0].mxu0 %v267
        %v392 = vpop.f32.mrb[0].mxu0
        %v393 = vadd.f32 %v245, %v392
        %v394 = vpop.f32.mrb[0].mxu0
        %395 = vmatprep.mubr.f32.mxu0 0.0
        %396 = vmatmul.mubr.f32.gmra.mrb[0].mxu0 %v270
        %v397 = vpop.f32.mrb[0].mxu0
        %v398 = vadd.f32 %v245, %v397
        %v399 = vpop.f32.mrb[0].mxu0
        %400 = vmatprep.mubr.f32.mxu0 0.0
        %401 = vmatmul.mubr.f32.gmra.mrb[0].mxu0 %v273
        %v402 = vpop.f32.mrb[0].mxu0
        %v403 = vadd.f32 %v245, %v402
        %v404 = vpop.f32.mrb[0].mxu0
        %405 = vmatprep.mubr.f32.mxu0 0.0
        %406 = vmatmul.mubr.f32.gmra.mrb[0].mxu0 %v276
        %v407 = vpop.f32.mrb[0].mxu0
        %v408 = vadd.f32 %v245, %v407
        %v409 = vpop.f32.mrb[0].mxu0
        %410 = vmatprep.mubr.f32.mxu0 0.0
        %411 = vmatmul.mubr.f32.gmra.mrb[0].mxu0 %v279
        %v412 = vpop.f32.mrb[0].mxu0
        %v413 = vadd.f32 %v245, %v412
        %v414 = vpop.f32.mrb[0].mxu0
        %415 = vmatprep.mubr.f32.mxu0 0.0
        %416 = vmatmul.mubr.f32.gmra.mrb[0].mxu0 %v282
        %v417 = vpop.f32.mrb[0].mxu0
        %v418 = vadd.f32 %v245, %v417
        %v419 = vpop.f32.mrb[0].mxu0
        %420 = vmatprep.mubr.f32.mxu0 0.0
        %421 = vmatmul.mubr.f32.gmra.mrb[0].mxu0 %v285
        %v422 = vpop.f32.mrb[0].mxu0
        %v423 = vadd.f32 %v245, %v422
        %v424 = vpop.f32.mrb[0].mxu0
        %425 = vmatprep.mubr.f32.mxu0 0.0
        %426 = vmatmul.mubr.f32.gmra.mrb[0].mxu0 %v288
        %v427 = vpop.f32.mrb[0].mxu0
        %v428 = vadd.f32 %v245, %v427
        %v429 = vpop.f32.mrb[0].mxu0
        %430 = vmatprep.mubr.f32.mxu0 0.0
        %431 = vmatmul.mubr.f32.gmra.mrb[0].mxu0 %v291
        %v432 = vpop.f32.mrb[0].mxu0
        %v433 = vadd.f32 %v245, %v432
        %v434 = vpop.f32.mrb[0].mxu0
        %435 = vmatprep.mubr.f32.mxu0 0.0
        %436 = vmatmul.mubr.f32.gmra.mrb[0].mxu0 %v294
        %v437 = vpop.f32.mrb[0].mxu0
        %v438 = vadd.f32 %v245, %v437
        %v439 = vpop.f32.mrb[0].mxu0
        %440 = vdwg.mxu0
        %s441 = smul.addr %s215, 8
        %s442 = scalar_lea.vmem [#allocation2], %s441
        %443 = vst [vmem:[%s442] sm:$0xff] %v363
        %444 = vst [vmem:[%s442 + $0x10] sm:$0xff] %v368
        %445 = vst [vmem:[%s442 + $0x20] sm:$0xff] %v373
        %446 = vst [vmem:[%s442 + $0x30] sm:$0xff] %v378
        %447 = vst [vmem:[%s442 + $0x40] sm:$0xff] %v383
        %448 = vst [vmem:[%s442 + $0x50] sm:$0xff] %v388
        %449 = vst [vmem:[%s442 + $0x60] sm:$0xff] %v393
        %450 = vst [vmem:[%s442 + $0x70] sm:$0xff] %v398
        %451 = vst [vmem:[%s442 + $0x80] sm:$0xff] %v403
        %452 = vst [vmem:[%s442 + $0x90] sm:$0xff] %v408
        %453 = vst [vmem:[%s442 + $0xa0] sm:$0xff] %v413
        %454 = vst [vmem:[%s442 + $0xb0] sm:$0xff] %v418
        %455 = vst [vmem:[%s442 + $0xc0] sm:$0xff] %v423
        %456 = vst [vmem:[%s442 + $0xd0] sm:$0xff] %v428
        %457 = vst [vmem:[%s442 + $0xe0] sm:$0xff] %v433
        %458 = vst [vmem:[%s442 + $0xf0] sm:$0xff] %v438
        %v459 = vld [vmem:[#allocation3] sm:$0xff]
        %v460 = vld [vmem:[#allocation3 + $0x8] sm:$0xff]
        %v461 = vld [vmem:[#allocation3 + $0x10] sm:$0xff]
        %v462 = vld [vmem:[#allocation3 + $0x18] sm:$0xff]
        %v463 = vld [vmem:[#allocation3 + $0x20] sm:$0xff]
        %v464 = vld [vmem:[#allocation3 + $0x28] sm:$0xff]
        %v465 = vld [vmem:[#allocation3 + $0x30] sm:$0xff]
        %v466 = vld [vmem:[#allocation3 + $0x38] sm:$0xff]
        %v467 = vld [vmem:[#allocation3 + $0x40] sm:$0xff]
        %v468 = vld [vmem:[#allocation3 + $0x48] sm:$0xff]
        %v469 = vld [vmem:[#allocation3 + $0x50] sm:$0xff]
        %v470 = vld [vmem:[#allocation3 + $0x58] sm:$0xff]
        %v471 = vld [vmem:[#allocation3 + $0x60] sm:$0xff]
        %v472 = vld [vmem:[#allocation3 + $0x68] sm:$0xff]
        %v473 = vld [vmem:[#allocation3 + $0x70] sm:$0xff]
        %v474 = vld [vmem:[#allocation3 + $0x78] sm:$0xff]
        %475 = vmax.xlane.f32.xlu0 %v363
        %v476 = vpop.xlane.xlu0 %475
        %477 = vmax.xlane.f32.xlu0 %v368
        %v478 = vpop.xlane.xlu0 %477
        %479 = vmax.xlane.f32.xlu0 %v373
        %v480 = vpop.xlane.xlu0 %479
        %481 = vmax.xlane.f32.xlu0 %v378
        %v482 = vpop.xlane.xlu0 %481
        %483 = vmax.xlane.f32.xlu0 %v383
        %v484 = vpop.xlane.xlu0 %483
        %485 = vmax.xlane.f32.xlu0 %v388
        %v486 = vpop.xlane.xlu0 %485
        %487 = vmax.xlane.f32.xlu0 %v393
        %v488 = vpop.xlane.xlu0 %487
        %489 = vmax.xlane.f32.xlu0 %v398
        %v490 = vpop.xlane.xlu0 %489
        %491 = vmax.xlane.f32.xlu0 %v403
        %v492 = vpop.xlane.xlu0 %491
        %493 = vmax.xlane.f32.xlu0 %v408
        %v494 = vpop.xlane.xlu0 %493
        %495 = vmax.xlane.f32.xlu0 %v413
        %v496 = vpop.xlane.xlu0 %495
        %497 = vmax.xlane.f32.xlu0 %v418
        %v498 = vpop.xlane.xlu0 %497
        %499 = vmax.xlane.f32.xlu0 %v423
        %v500 = vpop.xlane.xlu0 %499
        %501 = vmax.xlane.f32.xlu0 %v428
        %v502 = vpop.xlane.xlu0 %501
        %503 = vmax.xlane.f32.xlu0 %v433
        %v504 = vpop.xlane.xlu0 %503
        %505 = vmax.xlane.f32.xlu0 %v438
        %v506 = vpop.xlane.xlu0 %505
        %v507 = vmax.f32 %v459, %v476
        %v508 = vmax.f32 %v460, %v478
        %v509 = vmax.f32 %v461, %v480
        %v510 = vmax.f32 %v462, %v482
        %v511 = vmax.f32 %v463, %v484
        %v512 = vmax.f32 %v464, %v486
        %v513 = vmax.f32 %v465, %v488
        %v514 = vmax.f32 %v466, %v490
        %v515 = vmax.f32 %v467, %v492
        %v516 = vmax.f32 %v468, %v494
        %v517 = vmax.f32 %v469, %v496
        %v518 = vmax.f32 %v470, %v498
        %v519 = vmax.f32 %v471, %v500
        %v520 = vmax.f32 %v472, %v502
        %v521 = vmax.f32 %v473, %v504
        %v522 = vmax.f32 %v474, %v506
        %v523 = vld [vmem:[#allocation4] sm:$0xff]
        %v524 = vld [vmem:[#allocation4 + $0x8] sm:$0xff]
        %v525 = vld [vmem:[#allocation4 + $0x10] sm:$0xff]
        %v526 = vld [vmem:[#allocation4 + $0x18] sm:$0xff]
        %v527 = vld [vmem:[#allocation4 + $0x20] sm:$0xff]
        %v528 = vld [vmem:[#allocation4 + $0x28] sm:$0xff]
        %v529 = vld [vmem:[#allocation4 + $0x30] sm:$0xff]
        %v530 = vld [vmem:[#allocation4 + $0x38] sm:$0xff]
        %v531 = vld [vmem:[#allocation4 + $0x40] sm:$0xff]
        %v532 = vld [vmem:[#allocation4 + $0x48] sm:$0xff]
        %v533 = vld [vmem:[#allocation4 + $0x50] sm:$0xff]
        %v534 = vld [vmem:[#allocation4 + $0x58] sm:$0xff]
        %v535 = vld [vmem:[#allocation4 + $0x60] sm:$0xff]
        %v536 = vld [vmem:[#allocation4 + $0x68] sm:$0xff]
        %v537 = vld [vmem:[#allocation4 + $0x70] sm:$0xff]
        %v538 = vld [vmem:[#allocation4 + $0x78] sm:$0xff]
        %v539 = vsub.f32 %v459, %v507
        %v540 = vsub.f32 %v460, %v508
        %v541 = vsub.f32 %v461, %v509
        %v542 = vsub.f32 %v462, %v510
        %v543 = vsub.f32 %v463, %v511
        %v544 = vsub.f32 %v464, %v512
        %v545 = vsub.f32 %v465, %v513
        %v546 = vsub.f32 %v466, %v514
        %v547 = vsub.f32 %v467, %v515
        %v548 = vsub.f32 %v468, %v516
        %v549 = vsub.f32 %v469, %v517
        %v550 = vsub.f32 %v470, %v518
        %v551 = vsub.f32 %v471, %v519
        %v552 = vsub.f32 %v472, %v520
        %v553 = vsub.f32 %v473, %v521
        %v554 = vsub.f32 %v474, %v522
        %v555 = vmul.f32 %v539, 1.442695
        %v556 = vpow.pop %v555
        %v557 = vmul.f32 %v540, 1.442695
        %v558 = vpow.pop %v557
        %v559 = vmul.f32 %v541, 1.442695
        %v560 = vpow.pop %v559
        %v561 = vmul.f32 %v542, 1.442695
        %v562 = vpow.pop %v561
        %v563 = vmul.f32 %v543, 1.442695
        %v564 = vpow.pop %v563
        %v565 = vmul.f32 %v544, 1.442695
        %v566 = vpow.pop %v565
        %v567 = vmul.f32 %v545, 1.442695
        %v568 = vpow.pop %v567
        %v569 = vmul.f32 %v546, 1.442695
        %v570 = vpow.pop %v569
        %v571 = vmul.f32 %v547, 1.442695
        %v572 = vpow.pop %v571
        %v573 = vmul.f32 %v548, 1.442695
        %v574 = vpow.pop %v573
        %v575 = vmul.f32 %v549, 1.442695
        %v576 = vpow.pop %v575
        %v577 = vmul.f32 %v550, 1.442695
        %v578 = vpow.pop %v577
        %v579 = vmul.f32 %v551, 1.442695
        %v580 = vpow.pop %v579
        %v581 = vmul.f32 %v552, 1.442695
        %v582 = vpow.pop %v581
        %v583 = vmul.f32 %v553, 1.442695
        %v584 = vpow.pop %v583
        %v585 = vmul.f32 %v554, 1.442695
        %v586 = vpow.pop %v585
        %v587 = vmul.f32 %v523, %v556
        %v588 = vmul.f32 %v524, %v558
        %v589 = vmul.f32 %v525, %v560
        %v590 = vmul.f32 %v526, %v562
        %v591 = vmul.f32 %v527, %v564
        %v592 = vmul.f32 %v528, %v566
        %v593 = vmul.f32 %v529, %v568
        %v594 = vmul.f32 %v530, %v570
        %v595 = vmul.f32 %v531, %v572
        %v596 = vmul.f32 %v532, %v574
        %v597 = vmul.f32 %v533, %v576
        %v598 = vmul.f32 %v534, %v578
        %v599 = vmul.f32 %v535, %v580
        %v600 = vmul.f32 %v536, %v582
        %v601 = vmul.f32 %v537, %v584
        %v602 = vmul.f32 %v538, %v586
        %604 = vset.pattern.permute.xlu0 0
        %605 = vperm.xlu0 %604, %v507
        %v606 = vpop.permute.xlu0 %605
        %609 = vset.pattern.permute.xlu0 0
        %610 = vperm.xlu0 %609, %v508
        %v611 = vpop.permute.xlu0 %610
        %614 = vset.pattern.permute.xlu0 0
        %615 = vperm.xlu0 %614, %v509
        %v616 = vpop.permute.xlu0 %615
        %619 = vset.pattern.permute.xlu0 0
        %620 = vperm.xlu0 %619, %v510
        %v621 = vpop.permute.xlu0 %620
        %624 = vset.pattern.permute.xlu0 0
        %625 = vperm.xlu0 %624, %v511
        %v626 = vpop.permute.xlu0 %625
        %629 = vset.pattern.permute.xlu0 0
        %630 = vperm.xlu0 %629, %v512
        %v631 = vpop.permute.xlu0 %630
        %634 = vset.pattern.permute.xlu0 0
        %635 = vperm.xlu0 %634, %v513
        %v636 = vpop.permute.xlu0 %635
        %639 = vset.pattern.permute.xlu0 0
        %640 = vperm.xlu0 %639, %v514
        %v641 = vpop.permute.xlu0 %640
        %644 = vset.pattern.permute.xlu0 0
        %645 = vperm.xlu0 %644, %v515
        %v646 = vpop.permute.xlu0 %645
        %649 = vset.pattern.permute.xlu0 0
        %650 = vperm.xlu0 %649, %v516
        %v651 = vpop.permute.xlu0 %650
        %654 = vset.pattern.permute.xlu0 0
        %655 = vperm.xlu0 %654, %v517
        %v656 = vpop.permute.xlu0 %655
        %659 = vset.pattern.permute.xlu0 0
        %660 = vperm.xlu0 %659, %v518
        %v661 = vpop.permute.xlu0 %660
        %664 = vset.pattern.permute.xlu0 0
        %665 = vperm.xlu0 %664, %v519
        %v666 = vpop.permute.xlu0 %665
        %669 = vset.pattern.permute.xlu0 0
        %670 = vperm.xlu0 %669, %v520
        %v671 = vpop.permute.xlu0 %670
        %674 = vset.pattern.permute.xlu0 0
        %675 = vperm.xlu0 %674, %v521
        %v676 = vpop.permute.xlu0 %675
        %679 = vset.pattern.permute.xlu0 0
        %680 = vperm.xlu0 %679, %v522
        %v681 = vpop.permute.xlu0 %680
        %v683 = vsub.f32 %v363, %v606
        %v684 = vsub.f32 %v368, %v611
        %v685 = vsub.f32 %v373, %v616
        %v686 = vsub.f32 %v378, %v621
        %v687 = vsub.f32 %v383, %v626
        %v688 = vsub.f32 %v388, %v631
        %v689 = vsub.f32 %v393, %v636
        %v690 = vsub.f32 %v398, %v641
        %v691 = vsub.f32 %v403, %v646
        %v692 = vsub.f32 %v408, %v651
        %v693 = vsub.f32 %v413, %v656
        %v694 = vsub.f32 %v418, %v661
        %v695 = vsub.f32 %v423, %v666
        %v696 = vsub.f32 %v428, %v671
        %v697 = vsub.f32 %v433, %v676
        %v698 = vsub.f32 %v438, %v681
        %v699 = vmul.f32 %v683, 1.442695
        %v700 = vpow.pop %v699
        %v701 = vmul.f32 %v684, 1.442695
        %v702 = vpow.pop %v701
        %v703 = vmul.f32 %v685, 1.442695
        %v704 = vpow.pop %v703
        %v705 = vmul.f32 %v686, 1.442695
        %v706 = vpow.pop %v705
        %v707 = vmul.f32 %v687, 1.442695
        %v708 = vpow.pop %v707
        %v709 = vmul.f32 %v688, 1.442695
        %v710 = vpow.pop %v709
        %v711 = vmul.f32 %v689, 1.442695
        %v712 = vpow.pop %v711
        %v713 = vmul.f32 %v690, 1.442695
        %v714 = vpow.pop %v713
        %v715 = vmul.f32 %v691, 1.442695
        %v716 = vpow.pop %v715
        %v717 = vmul.f32 %v692, 1.442695
        %v718 = vpow.pop %v717
        %v719 = vmul.f32 %v693, 1.442695
        %v720 = vpow.pop %v719
        %v721 = vmul.f32 %v694, 1.442695
        %v722 = vpow.pop %v721
        %v723 = vmul.f32 %v695, 1.442695
        %v724 = vpow.pop %v723
        %v725 = vmul.f32 %v696, 1.442695
        %v726 = vpow.pop %v725
        %v727 = vmul.f32 %v697, 1.442695
        %v728 = vpow.pop %v727
        %v729 = vmul.f32 %v698, 1.442695
        %v730 = vpow.pop %v729
        %731 = vadd.xlane.f32.xlu0 %v700
        %v732 = vpop.xlane.xlu0 %731
        %733 = vadd.xlane.f32.xlu0 %v702
        %v734 = vpop.xlane.xlu0 %733
        %735 = vadd.xlane.f32.xlu0 %v704
        %v736 = vpop.xlane.xlu0 %735
        %737 = vadd.xlane.f32.xlu0 %v706
        %v738 = vpop.xlane.xlu0 %737
        %739 = vadd.xlane.f32.xlu0 %v708
        %v740 = vpop.xlane.xlu0 %739
        %741 = vadd.xlane.f32.xlu0 %v710
        %v742 = vpop.xlane.xlu0 %741
        %743 = vadd.xlane.f32.xlu0 %v712
        %v744 = vpop.xlane.xlu0 %743
        %745 = vadd.xlane.f32.xlu0 %v714
        %v746 = vpop.xlane.xlu0 %745
        %747 = vadd.xlane.f32.xlu0 %v716
        %v748 = vpop.xlane.xlu0 %747
        %749 = vadd.xlane.f32.xlu0 %v718
        %v750 = vpop.xlane.xlu0 %749
        %751 = vadd.xlane.f32.xlu0 %v720
        %v752 = vpop.xlane.xlu0 %751
        %753 = vadd.xlane.f32.xlu0 %v722
        %v754 = vpop.xlane.xlu0 %753
        %755 = vadd.xlane.f32.xlu0 %v724
        %v756 = vpop.xlane.xlu0 %755
        %757 = vadd.xlane.f32.xlu0 %v726
        %v758 = vpop.xlane.xlu0 %757
        %759 = vadd.xlane.f32.xlu0 %v728
        %v760 = vpop.xlane.xlu0 %759
        %761 = vadd.xlane.f32.xlu0 %v730
        %v762 = vpop.xlane.xlu0 %761
        %v763 = vadd.f32 %v587, %v732
        %v764 = vadd.f32 %v588, %v734
        %v765 = vadd.f32 %v589, %v736
        %v766 = vadd.f32 %v590, %v738
        %v767 = vadd.f32 %v591, %v740
        %v768 = vadd.f32 %v592, %v742
        %v769 = vadd.f32 %v593, %v744
        %v770 = vadd.f32 %v594, %v746
        %v771 = vadd.f32 %v595, %v748
        %v772 = vadd.f32 %v596, %v750
        %v773 = vadd.f32 %v597, %v752
        %v774 = vadd.f32 %v598, %v754
        %v775 = vadd.f32 %v599, %v756
        %v776 = vadd.f32 %v600, %v758
        %v777 = vadd.f32 %v601, %v760
        %v778 = vadd.f32 %v602, %v762
        %vm779 = vcmask 7168
        %780 = vst.msk [vmem:[#allocation4] sm:$0xff] %vm779, %v763
        %781 = vst.msk [vmem:[#allocation4 + $0x8] sm:$0xff] %vm779, %v764
        %782 = vst.msk [vmem:[#allocation4 + $0x10] sm:$0xff] %vm779, %v765
        %783 = vst.msk [vmem:[#allocation4 + $0x18] sm:$0xff] %vm779, %v766
        %784 = vst.msk [vmem:[#allocation4 + $0x20] sm:$0xff] %vm779, %v767
        %785 = vst.msk [vmem:[#allocation4 + $0x28] sm:$0xff] %vm779, %v768
        %786 = vst.msk [vmem:[#allocation4 + $0x30] sm:$0xff] %vm779, %v769
        %787 = vst.msk [vmem:[#allocation4 + $0x38] sm:$0xff] %vm779, %v770
        %788 = vst.msk [vmem:[#allocation4 + $0x40] sm:$0xff] %vm779, %v771
        %789 = vst.msk [vmem:[#allocation4 + $0x48] sm:$0xff] %vm779, %v772
        %790 = vst.msk [vmem:[#allocation4 + $0x50] sm:$0xff] %vm779, %v773
        %791 = vst.msk [vmem:[#allocation4 + $0x58] sm:$0xff] %vm779, %v774
        %792 = vst.msk [vmem:[#allocation4 + $0x60] sm:$0xff] %vm779, %v775
        %793 = vst.msk [vmem:[#allocation4 + $0x68] sm:$0xff] %vm779, %v776
        %794 = vst.msk [vmem:[#allocation4 + $0x70] sm:$0xff] %vm779, %v777
        %795 = vst.msk [vmem:[#allocation4 + $0x78] sm:$0xff] %vm779, %v778
        %796 = vst.msk [vmem:[#allocation3] sm:$0xff] %vm779, %v507
        %797 = vst.msk [vmem:[#allocation3 + $0x8] sm:$0xff] %vm779, %v508
        %798 = vst.msk [vmem:[#allocation3 + $0x10] sm:$0xff] %vm779, %v509
        %799 = vst.msk [vmem:[#allocation3 + $0x18] sm:$0xff] %vm779, %v510
        %800 = vst.msk [vmem:[#allocation3 + $0x20] sm:$0xff] %vm779, %v511
        %801 = vst.msk [vmem:[#allocation3 + $0x28] sm:$0xff] %vm779, %v512
        %802 = vst.msk [vmem:[#allocation3 + $0x30] sm:$0xff] %vm779, %v513
        %803 = vst.msk [vmem:[#allocation3 + $0x38] sm:$0xff] %vm779, %v514
        %804 = vst.msk [vmem:[#allocation3 + $0x40] sm:$0xff] %vm779, %v515
        %805 = vst.msk [vmem:[#allocation3 + $0x48] sm:$0xff] %vm779, %v516
        %806 = vst.msk [vmem:[#allocation3 + $0x50] sm:$0xff] %vm779, %v517
        %807 = vst.msk [vmem:[#allocation3 + $0x58] sm:$0xff] %vm779, %v518
        %808 = vst.msk [vmem:[#allocation3 + $0x60] sm:$0xff] %vm779, %v519
        %809 = vst.msk [vmem:[#allocation3 + $0x68] sm:$0xff] %vm779, %v520
        %810 = vst.msk [vmem:[#allocation3 + $0x70] sm:$0xff] %vm779, %v521
        %811 = vst.msk [vmem:[#allocation3 + $0x78] sm:$0xff] %vm779, %v522
        %p812 = scmp.eq.s32.totalorder %s20, 1
        // Predicated region
        $region37: #{tpu_custom_call.1} parent=31 // pred_check
          %p813 = pneg %p812
        $region38: #{tpu_custom_call.1} parent=31 // pred_check_branch
          %815 = sbr.rel (%p813) target = $region40
        $region39: #{tpu_custom_call.1} parent=31 // pred_region
          %v816 = vld [vmem:[#allocation3] sm:$0xff]
          %v817 = vld [vmem:[#allocation3 + $0x8] sm:$0xff]
          %v818 = vld [vmem:[#allocation3 + $0x10] sm:$0xff]
          %v819 = vld [vmem:[#allocation3 + $0x18] sm:$0xff]
          %v820 = vld [vmem:[#allocation3 + $0x20] sm:$0xff]
          %v821 = vld [vmem:[#allocation3 + $0x28] sm:$0xff]
          %v822 = vld [vmem:[#allocation3 + $0x30] sm:$0xff]
          %v823 = vld [vmem:[#allocation3 + $0x38] sm:$0xff]
          %v824 = vld [vmem:[#allocation3 + $0x40] sm:$0xff]
          %v825 = vld [vmem:[#allocation3 + $0x48] sm:$0xff]
          %v826 = vld [vmem:[#allocation3 + $0x50] sm:$0xff]
          %v827 = vld [vmem:[#allocation3 + $0x58] sm:$0xff]
          %v828 = vld [vmem:[#allocation3 + $0x60] sm:$0xff]
          %v829 = vld [vmem:[#allocation3 + $0x68] sm:$0xff]
          %v830 = vld [vmem:[#allocation3 + $0x70] sm:$0xff]
          %v831 = vld [vmem:[#allocation3 + $0x78] sm:$0xff]
          %v832 = vld [vmem:[#allocation4] sm:$0xff]
          %v833 = vld [vmem:[#allocation4 + $0x8] sm:$0xff]
          %v834 = vld [vmem:[#allocation4 + $0x10] sm:$0xff]
          %v835 = vld [vmem:[#allocation4 + $0x18] sm:$0xff]
          %v836 = vld [vmem:[#allocation4 + $0x20] sm:$0xff]
          %v837 = vld [vmem:[#allocation4 + $0x28] sm:$0xff]
          %v838 = vld [vmem:[#allocation4 + $0x30] sm:$0xff]
          %v839 = vld [vmem:[#allocation4 + $0x38] sm:$0xff]
          %v840 = vld [vmem:[#allocation4 + $0x40] sm:$0xff]
          %v841 = vld [vmem:[#allocation4 + $0x48] sm:$0xff]
          %v842 = vld [vmem:[#allocation4 + $0x50] sm:$0xff]
          %v843 = vld [vmem:[#allocation4 + $0x58] sm:$0xff]
          %v844 = vld [vmem:[#allocation4 + $0x60] sm:$0xff]
          %v845 = vld [vmem:[#allocation4 + $0x68] sm:$0xff]
          %v846 = vld [vmem:[#allocation4 + $0x70] sm:$0xff]
          %v847 = vld [vmem:[#allocation4 + $0x78] sm:$0xff]
          %v848 = vlog2.pop %v832
          %v849 = vmul.f32 %v848, 0.6931472
          %v850 = vlog2.pop %v833
          %v851 = vmul.f32 %v850, 0.6931472
          %v852 = vlog2.pop %v834
          %v853 = vmul.f32 %v852, 0.6931472
          %v854 = vlog2.pop %v835
          %v855 = vmul.f32 %v854, 0.6931472
          %v856 = vlog2.pop %v836
          %v857 = vmul.f32 %v856, 0.6931472
          %v858 = vlog2.pop %v837
          %v859 = vmul.f32 %v858, 0.6931472
          %v860 = vlog2.pop %v838
          %v861 = vmul.f32 %v860, 0.6931472
          %v862 = vlog2.pop %v839
          %v863 = vmul.f32 %v862, 0.6931472
          %v864 = vlog2.pop %v840
          %v865 = vmul.f32 %v864, 0.6931472
          %v866 = vlog2.pop %v841
          %v867 = vmul.f32 %v866, 0.6931472
          %v868 = vlog2.pop %v842
          %v869 = vmul.f32 %v868, 0.6931472
          %v870 = vlog2.pop %v843
          %v871 = vmul.f32 %v870, 0.6931472
          %v872 = vlog2.pop %v844
          %v873 = vmul.f32 %v872, 0.6931472
          %v874 = vlog2.pop %v845
          %v875 = vmul.f32 %v874, 0.6931472
          %v876 = vlog2.pop %v846
          %v877 = vmul.f32 %v876, 0.6931472
          %v878 = vlog2.pop %v847
          %v879 = vmul.f32 %v878, 0.6931472
          %v880 = vadd.f32 %v816, %v849
          %v881 = vadd.f32 %v817, %v851
          %v882 = vadd.f32 %v818, %v853
          %v883 = vadd.f32 %v819, %v855
          %v884 = vadd.f32 %v820, %v857
          %v885 = vadd.f32 %v821, %v859
          %v886 = vadd.f32 %v822, %v861
          %v887 = vadd.f32 %v823, %v863
          %v888 = vadd.f32 %v824, %v865
          %v889 = vadd.f32 %v825, %v867
          %v890 = vadd.f32 %v826, %v869
          %v891 = vadd.f32 %v827, %v871
          %v892 = vadd.f32 %v828, %v873
          %v893 = vadd.f32 %v829, %v875
          %v894 = vadd.f32 %v830, %v877
          %v895 = vadd.f32 %v831, %v879
          %v896 = vld [vmem:[#allocation2] sm:$0xff]
          %v897 = vld [vmem:[#allocation2 + $0x8] sm:$0xff]
          %v898 = vld [vmem:[#allocation2 + $0x10] sm:$0xff]
          %v899 = vld [vmem:[#allocation2 + $0x18] sm:$0xff]
          %v900 = vld [vmem:[#allocation2 + $0x20] sm:$0xff]
          %v901 = vld [vmem:[#allocation2 + $0x28] sm:$0xff]
          %v902 = vld [vmem:[#allocation2 + $0x30] sm:$0xff]
          %v903 = vld [vmem:[#allocation2 + $0x38] sm:$0xff]
          %v904 = vld [vmem:[#allocation2 + $0x40] sm:$0xff]
          %v905 = vld [vmem:[#allocation2 + $0x48] sm:$0xff]
          %v906 = vld [vmem:[#allocation2 + $0x50] sm:$0xff]
          %v907 = vld [vmem:[#allocation2 + $0x58] sm:$0xff]
          %v908 = vld [vmem:[#allocation2 + $0x60] sm:$0xff]
          %v909 = vld [vmem:[#allocation2 + $0x68] sm:$0xff]
          %v910 = vld [vmem:[#allocation2 + $0x70] sm:$0xff]
          %v911 = vld [vmem:[#allocation2 + $0x78] sm:$0xff]
          %v912 = vld [vmem:[#allocation2 + $0x80] sm:$0xff]
          %v913 = vld [vmem:[#allocation2 + $0x88] sm:$0xff]
          %v914 = vld [vmem:[#allocation2 + $0x90] sm:$0xff]
          %v915 = vld [vmem:[#allocation2 + $0x98] sm:$0xff]
          %v916 = vld [vmem:[#allocation2 + $0xa0] sm:$0xff]
          %v917 = vld [vmem:[#allocation2 + $0xa8] sm:$0xff]
          %v918 = vld [vmem:[#allocation2 + $0xb0] sm:$0xff]
          %v919 = vld [vmem:[#allocation2 + $0xb8] sm:$0xff]
          %v920 = vld [vmem:[#allocation2 + $0xc0] sm:$0xff]
          %v921 = vld [vmem:[#allocation2 + $0xc8] sm:$0xff]
          %v922 = vld [vmem:[#allocation2 + $0xd0] sm:$0xff]
          %v923 = vld [vmem:[#allocation2 + $0xd8] sm:$0xff]
          %v924 = vld [vmem:[#allocation2 + $0xe0] sm:$0xff]
          %v925 = vld [vmem:[#allocation2 + $0xe8] sm:$0xff]
          %v926 = vld [vmem:[#allocation2 + $0xf0] sm:$0xff]
          %v927 = vld [vmem:[#allocation2 + $0xf8] sm:$0xff]
          %929 = vset.pattern.permute.xlu0 0
          %930 = vperm.xlu0 %929, %v880
          %v931 = vpop.permute.xlu0 %930
          %934 = vset.pattern.permute.xlu0 0
          %935 = vperm.xlu0 %934, %v881
          %v936 = vpop.permute.xlu0 %935
          %939 = vset.pattern.permute.xlu0 0
          %940 = vperm.xlu0 %939, %v882
          %v941 = vpop.permute.xlu0 %940
          %944 = vset.pattern.permute.xlu0 0
          %945 = vperm.xlu0 %944, %v883
          %v946 = vpop.permute.xlu0 %945
          %949 = vset.pattern.permute.xlu0 0
          %950 = vperm.xlu0 %949, %v884
          %v951 = vpop.permute.xlu0 %950
          %954 = vset.pattern.permute.xlu0 0
          %955 = vperm.xlu0 %954, %v885
          %v956 = vpop.permute.xlu0 %955
          %959 = vset.pattern.permute.xlu0 0
          %960 = vperm.xlu0 %959, %v886
          %v961 = vpop.permute.xlu0 %960
          %964 = vset.pattern.permute.xlu0 0
          %965 = vperm.xlu0 %964, %v887
          %v966 = vpop.permute.xlu0 %965
          %969 = vset.pattern.permute.xlu0 0
          %970 = vperm.xlu0 %969, %v888
          %v971 = vpop.permute.xlu0 %970
          %974 = vset.pattern.permute.xlu0 0
          %975 = vperm.xlu0 %974, %v889
          %v976 = vpop.permute.xlu0 %975
          %979 = vset.pattern.permute.xlu0 0
          %980 = vperm.xlu0 %979, %v890
          %v981 = vpop.permute.xlu0 %980
          %984 = vset.pattern.permute.xlu0 0
          %985 = vperm.xlu0 %984, %v891
          %v986 = vpop.permute.xlu0 %985
          %989 = vset.pattern.permute.xlu0 0
          %990 = vperm.xlu0 %989, %v892
          %v991 = vpop.permute.xlu0 %990
          %994 = vset.pattern.permute.xlu0 0
          %995 = vperm.xlu0 %994, %v893
          %v996 = vpop.permute.xlu0 %995
          %999 = vset.pattern.permute.xlu0 0
          %1000 = vperm.xlu0 %999, %v894
          %v1001 = vpop.permute.xlu0 %1000
          %1004 = vset.pattern.permute.xlu0 0
          %1005 = vperm.xlu0 %1004, %v895
          %v1006 = vpop.permute.xlu0 %1005
          %v1008 = vsub.f32 %v896, %v931
          %v1009 = vsub.f32 %v897, %v931
          %v1010 = vsub.f32 %v898, %v936
          %v1011 = vsub.f32 %v899, %v936
          %v1012 = vsub.f32 %v900, %v941
          %v1013 = vsub.f32 %v901, %v941
          %v1014 = vsub.f32 %v902, %v946
          %v1015 = vsub.f32 %v903, %v946
          %v1016 = vsub.f32 %v904, %v951
          %v1017 = vsub.f32 %v905, %v951
          %v1018 = vsub.f32 %v906, %v956
          %v1019 = vsub.f32 %v907, %v956
          %v1020 = vsub.f32 %v908, %v961
          %v1021 = vsub.f32 %v909, %v961
          %v1022 = vsub.f32 %v910, %v966
          %v1023 = vsub.f32 %v911, %v966
          %v1024 = vsub.f32 %v912, %v971
          %v1025 = vsub.f32 %v913, %v971
          %v1026 = vsub.f32 %v914, %v976
          %v1027 = vsub.f32 %v915, %v976
          %v1028 = vsub.f32 %v916, %v981
          %v1029 = vsub.f32 %v917, %v981
          %v1030 = vsub.f32 %v918, %v986
          %v1031 = vsub.f32 %v919, %v986
          %v1032 = vsub.f32 %v920, %v991
          %v1033 = vsub.f32 %v921, %v991
          %v1034 = vsub.f32 %v922, %v996
          %v1035 = vsub.f32 %v923, %v996
          %v1036 = vsub.f32 %v924, %v1001
          %v1037 = vsub.f32 %v925, %v1001
          %v1038 = vsub.f32 %v926, %v1006
          %v1039 = vsub.f32 %v927, %v1006
          %1040 = vst [vmem:[#allocation5] sm:$0xff] %v1008
          %1041 = vst [vmem:[#allocation5 + $0x8] sm:$0xff] %v1009
          %1042 = vst [vmem:[#allocation5 + $0x10] sm:$0xff] %v1010
          %1043 = vst [vmem:[#allocation5 + $0x18] sm:$0xff] %v1011
          %1044 = vst [vmem:[#allocation5 + $0x20] sm:$0xff] %v1012
          %1045 = vst [vmem:[#allocation5 + $0x28] sm:$0xff] %v1013
          %1046 = vst [vmem:[#allocation5 + $0x30] sm:$0xff] %v1014
          %1047 = vst [vmem:[#allocation5 + $0x38] sm:$0xff] %v1015
          %1048 = vst [vmem:[#allocation5 + $0x40] sm:$0xff] %v1016
          %1049 = vst [vmem:[#allocation5 + $0x48] sm:$0xff] %v1017
          %1050 = vst [vmem:[#allocation5 + $0x50] sm:$0xff] %v1018
          %1051 = vst [vmem:[#allocation5 + $0x58] sm:$0xff] %v1019
          %1052 = vst [vmem:[#allocation5 + $0x60] sm:$0xff] %v1020
          %1053 = vst [vmem:[#allocation5 + $0x68] sm:$0xff] %v1021
          %1054 = vst [vmem:[#allocation5 + $0x70] sm:$0xff] %v1022
          %1055 = vst [vmem:[#allocation5 + $0x78] sm:$0xff] %v1023
          %1056 = vst [vmem:[#allocation5 + $0x80] sm:$0xff] %v1024
          %1057 = vst [vmem:[#allocation5 + $0x88] sm:$0xff] %v1025
          %1058 = vst [vmem:[#allocation5 + $0x90] sm:$0xff] %v1026
          %1059 = vst [vmem:[#allocation5 + $0x98] sm:$0xff] %v1027
          %1060 = vst [vmem:[#allocation5 + $0xa0] sm:$0xff] %v1028
          %1061 = vst [vmem:[#allocation5 + $0xa8] sm:$0xff] %v1029
          %1062 = vst [vmem:[#allocation5 + $0xb0] sm:$0xff] %v1030
          %1063 = vst [vmem:[#allocation5 + $0xb8] sm:$0xff] %v1031
          %1064 = vst [vmem:[#allocation5 + $0xc0] sm:$0xff] %v1032
          %1065 = vst [vmem:[#allocation5 + $0xc8] sm:$0xff] %v1033
          %1066 = vst [vmem:[#allocation5 + $0xd0] sm:$0xff] %v1034
          %1067 = vst [vmem:[#allocation5 + $0xd8] sm:$0xff] %v1035
          %1068 = vst [vmem:[#allocation5 + $0xe0] sm:$0xff] %v1036
          %1069 = vst [vmem:[#allocation5 + $0xe8] sm:$0xff] %v1037
          %1070 = vst [vmem:[#allocation5 + $0xf0] sm:$0xff] %v1038
          %1071 = vst [vmem:[#allocation5 + $0xf8] sm:$0xff] %v1039
        $region40: #{tpu_custom_call.1} parent=31 // pred_fallthru
          _
        // Predicated region
        $region41: #{tpu_custom_call.1} parent=31 // pred_check
          %p1072 = pneg %p113
        $region42: #{tpu_custom_call.1} parent=31 // pred_check_branch
          %1074 = sbr.rel (%p1072) target = $region44
        $region43: #{tpu_custom_call.1} parent=31 // pred_region
          %s1075 = smul.u32 16, %s19
          %s1077 = ssub.s32 4096, 4096
          %1078 = vsyncadd [#allocation6], %s1077
          %s1079 = smul.addr %s1075, 2
          %s1080 = smul.addr %s1079, 128
          %s1081 = scalar_lea.hbm %s3, %s1080
          %s1082 = sshll.u32 [#allocation5], 4
          %s1083 = int_to_ptr.vmem [resolvable:$true] %s1082
          %1088 = dma.vmem_to_hbm [thread:$0]  %s1083, 4096, %s1081, [#allocation6], 256, 256, 16
        $region44: #{tpu_custom_call.1} parent=31 // pred_fallthru
          _
        // Predicated region
        $region45: #{tpu_custom_call.1} parent=31 // pred_check
          %p1089 = pneg %p113
        $region46: #{tpu_custom_call.1} parent=31 // pred_check_branch
          %1091 = sbr.rel (%p1089) target = $region48
        $region47: #{tpu_custom_call.1} parent=31 // pred_region
          %1092 = dma.done [#allocation6], 4096
        $region48: #{tpu_custom_call.1} parent=31 // pred_fallthru
          _
      $region32: #{tpu_custom_call.1} parent=5 // pred_fallthru
        _
      %p1093 = scmp.le.s32.totalorder 2, %s10
      // Predicated region
      $region49: #{tpu_custom_call.1} parent=5 // pred_check
        %p1094 = pneg %p1093
      $region50: #{tpu_custom_call.1} parent=5 // pred_check_branch
        %1096 = sbr.rel (%p1094) target = $region52
      $region51: #{tpu_custom_call.1} parent=5 // pred_region
        %s1097 = ssub.s32 %s10, 2
      $region52: #{tpu_custom_call.1} parent=5 // pred_fallthru
        _
    $region6: #{tpu_custom_call.1} parent=1 // loop_footer
      %s14 = sadd.s32 1, %s10
    $region7: #{tpu_custom_call.1} parent=1 // loop_footer_branch
      %9 = sbr.rel target = $region3
    $region8: #{tpu_custom_call.1} parent=1 // loop_exit
      _
    %1098 = vsyncpa [#allocation6], 1
    %s1099 = scalar_lea.sflag [#allocation6], 1
    %1100 = vsyncpa %s1099, 1

</llo_original>
